<compile_context>
chip_gen: v7x
topology: tpu7x:2x2x1
jax: 0.10.0
libtpu: 0.0.40
codegen_flags: <defaults>
</compile_context>

<pallas_src>
import math

import jax
import jax.numpy as jnp
from jax.experimental import pallas as pl
from jax.experimental.pallas import tpu as pltpu

_TWO_PI = 2.0 * math.pi


def _round_up(n, m):
    return ((n + m - 1) // m) * m


def _learned_sinusoidal_kernel(x_ref, w_ref, mx_ref, ms_ref, mc_ref, o_ref):
    # x_ref: (TB, 1) f32; w_ref/m*_ref: (1, P) f32 (resident); o_ref: (TB, P) f32
    x = x_ref[...]                      # (TB, 1)
    xs = x * _TWO_PI                    # scale the narrow column only (VPU)
    f = xs * w_ref[...]                 # (TB, P) broadcast outer product (VPU)
    # Single lane-dense, unmasked store: lane 0 carries x, next half lanes sin,
    # next half lanes cos, tail lanes are zero padding (sliced off in wrapper).
    o_ref[...] = (mx_ref[...] * x
                  + ms_ref[...] * jnp.sin(f)
                  + mc_ref[...] * jnp.cos(f))


def learned_sinusoidal_pos_emb(x, weights, *, block_rows=512):
    """x: (B,) float, weights: (half_dim,) float -> (B, 1 + 2*half_dim) f32."""
    b = x.shape[0]
    half = weights.shape[0]
    out_dim = 1 + 2 * half
    p = _round_up(out_dim, 128)         # lane-dense (128-multiple) output width

    # Batch tile: multiple of 8 sublanes, capped so tiles stay small in VMEM
    # (fits comfortably under v7x's tighter scoped VMEM limit).
    tb = min(block_rows, _round_up(max(b, 1), 8))
    tb = _round_up(tb, 8)
    bp = _round_up(b, tb)               # pad batch to a whole number of tiles

    x2d = x.astype(jnp.float32).reshape(b, 1)
    if bp != b:
        x2d = jnp.pad(x2d, ((0, bp - b), (0, 0)))

    # Tiny resident rows: duplicated weights + one-hot selectors for the
    # [x | sin | cos | 0-pad] lane layout.
    w = weights.astype(jnp.float32)
    col = jnp.arange(p, dtype=jnp.int32)
    mask_x = (col == 0).astype(jnp.float32)[None, :]
    mask_sin = ((col >= 1) & (col < 1 + half)).astype(jnp.float32)[None, :]
    mask_cos = ((col >= 1 + half) & (col < out_dim)).astype(jnp.float32)[None, :]
    w_big = jnp.zeros((p,), jnp.float32)
    w_big = w_big.at[1:1 + half].set(w).at[1 + half:out_dim].set(w)[None, :]

    grid = (bp // tb,)
    const_spec = pl.BlockSpec((1, p), lambda i: (0, 0))   # stays resident

    cost = pl.CostEstimate(
        flops=5 * bp * p,
        transcendentals=2 * bp * p,
        bytes_accessed=4 * (bp + 4 * p + bp * p),
    )

    out_padded = pl.pallas_call(
        _learned_sinusoidal_kernel,
        out_shape=jax.ShapeDtypeStruct((bp, p), jnp.float32),
        grid=grid,
        in_specs=[
            pl.BlockSpec((tb, 1), lambda i: (i, 0)),
            const_spec, const_spec, const_spec, const_spec,
        ],
        out_specs=pl.BlockSpec((tb, p), lambda i: (i, 0)),
        compiler_params=pltpu.CompilerParams(
            dimension_semantics=("parallel",)),
        cost_estimate=cost,
    )(x2d, w_big, mask_x, mask_sin, mask_cos)

    return out_padded[:b, :out_dim]


def _reference(x, weights):
    x2d = x.reshape(-1, 1).astype(jnp.float32)
    f = x2d * weights.reshape(1, -1).astype(jnp.float32) * _TWO_PI
    return jnp.concatenate([x2d, jnp.sin(f), jnp.cos(f)], axis=-1)


if __name__ == "__main__":
    dim = 32              # module asserts dim % 2 == 0
    half_dim = dim // 2
    batch = 8

    key = jax.random.PRNGKey(0)
    k_w, k_x = jax.random.split(key)
    # Deterministic synthetic parameter init (torch.randn equivalent).
    weights = jax.random.normal(k_w, (half_dim,), dtype=jnp.float32)
    x = jax.random.normal(k_x, (batch,), dtype=jnp.float32)

    out = learned_sinusoidal_pos_emb(x, weights)
    out = jax.block_until_ready(out)

    ref = _reference(x, weights)
    assert out.shape == (batch, dim + 1), out.shape
    assert jnp.allclose(out, ref, atol=1e-5, rtol=1e-5), "mismatch vs reference"

    print("KERNEL_OK")
</pallas_src>

<mosaic_0001>
module attributes {stable_mosaic.version = 11 : i64} {
  func.func @_learned_sinusoidal_kernel(%arg0: i32, %arg1: memref<8x1xf32, #tpu.memory_space<vmem>>, %arg2: memref<1x128xf32, #tpu.memory_space<vmem>>, %arg3: memref<1x128xf32, #tpu.memory_space<vmem>>, %arg4: memref<1x128xf32, #tpu.memory_space<vmem>>, %arg5: memref<1x128xf32, #tpu.memory_space<vmem>>, %arg6: memref<8x128xf32, #tpu.memory_space<vmem>>) attributes {dimension_semantics = [#tpu.dimension_semantics<parallel>], iteration_bounds = array<i64: 1>, scalar_prefetch = 0 : i64, scratch_operands = 0 : i64, tpu.core_type = #tpu.core_type<tc>, window_params = [{transform_indices = @transform_0, window_bounds = array<i64: 8, 1>}, {pipeline_mode = #tpu.pipeline_mode<synchronous>, transform_indices = @transform_1, window_bounds = array<i64: 1, 128>}, {pipeline_mode = #tpu.pipeline_mode<synchronous>, transform_indices = @transform_2, window_bounds = array<i64: 1, 128>}, {pipeline_mode = #tpu.pipeline_mode<synchronous>, transform_indices = @transform_3, window_bounds = array<i64: 1, 128>}, {pipeline_mode = #tpu.pipeline_mode<synchronous>, transform_indices = @transform_4, window_bounds = array<i64: 1, 128>}, {transform_indices = @transform_5, window_bounds = array<i64: 8, 128>}]} {
    %c0 = arith.constant 0 : index
    %c0_0 = arith.constant 0 : index
    %0 = vector.load %arg1[%c0, %c0_0] : memref<8x1xf32, #tpu.memory_space<vmem>>, vector<8x1xf32>
    %cst = arith.constant 6.28318548 : f32
    %1 = vector.broadcast %cst : f32 to vector<8x1xf32>
    %2 = arith.mulf %0, %1 : vector<8x1xf32>
    %c0_1 = arith.constant 0 : index
    %c0_2 = arith.constant 0 : index
    %3 = vector.load %arg2[%c0_1, %c0_2] : memref<1x128xf32, #tpu.memory_space<vmem>>, vector<1x128xf32>
    %4 = vector.broadcast %2 : vector<8x1xf32> to vector<8x128xf32>
    %5 = vector.broadcast %3 : vector<1x128xf32> to vector<8x128xf32>
    %6 = arith.mulf %4, %5 : vector<8x128xf32>
    %c0_3 = arith.constant 0 : index
    %c0_4 = arith.constant 0 : index
    %7 = vector.load %arg3[%c0_3, %c0_4] : memref<1x128xf32, #tpu.memory_space<vmem>>, vector<1x128xf32>
    %8 = vector.broadcast %7 : vector<1x128xf32> to vector<8x128xf32>
    %9 = vector.broadcast %0 : vector<8x1xf32> to vector<8x128xf32>
    %10 = arith.mulf %8, %9 : vector<8x128xf32>
    %c0_5 = arith.constant 0 : index
    %c0_6 = arith.constant 0 : index
    %11 = vector.load %arg4[%c0_5, %c0_6] : memref<1x128xf32, #tpu.memory_space<vmem>>, vector<1x128xf32>
    %12 = math.sin %6 : vector<8x128xf32>
    %13 = vector.broadcast %11 : vector<1x128xf32> to vector<8x128xf32>
    %14 = arith.mulf %13, %12 : vector<8x128xf32>
    %15 = arith.addf %10, %14 : vector<8x128xf32>
    %c0_7 = arith.constant 0 : index
    %c0_8 = arith.constant 0 : index
    %16 = vector.load %arg5[%c0_7, %c0_8] : memref<1x128xf32, #tpu.memory_space<vmem>>, vector<1x128xf32>
    %17 = math.cos %6 : vector<8x128xf32>
    %18 = vector.broadcast %16 : vector<1x128xf32> to vector<8x128xf32>
    %19 = arith.mulf %18, %17 : vector<8x128xf32>
    %20 = arith.addf %15, %19 : vector<8x128xf32>
    %c0_9 = arith.constant 0 : index
    %c0_10 = arith.constant 0 : index
    %21 = vector.load %arg6[%c0_9, %c0_10] : memref<8x128xf32, #tpu.memory_space<vmem>>, vector<8x128xf32>
    tpu.vector_store %arg6[%c0_9, %c0_10], %20 {strides = array<i32>} : memref<8x128xf32, #tpu.memory_space<vmem>>, vector<8x128xf32>,
    return
  }
  func.func @transform_0(%arg0: i32) -> (i32, i32) {
    %c0_i32 = arith.constant 0 : i32
    %c0_i32_0 = arith.constant 0 : i32
    return %arg0, %c0_i32 : i32, i32
  }
  func.func @transform_1(%arg0: i32) -> (i32, i32) {
    %c0_i32 = arith.constant 0 : i32
    %c0_i32_0 = arith.constant 0 : i32
    %c0_i32_1 = arith.constant 0 : i32
    return %c0_i32, %c0_i32_0 : i32, i32
  }
  func.func @transform_2(%arg0: i32) -> (i32, i32) {
    %c0_i32 = arith.constant 0 : i32
    %c0_i32_0 = arith.constant 0 : i32
    %c0_i32_1 = arith.constant 0 : i32
    return %c0_i32, %c0_i32_0 : i32, i32
  }
  func.func @transform_3(%arg0: i32) -> (i32, i32) {
    %c0_i32 = arith.constant 0 : i32
    %c0_i32_0 = arith.constant 0 : i32
    %c0_i32_1 = arith.constant 0 : i32
    return %c0_i32, %c0_i32_0 : i32, i32
  }
  func.func @transform_4(%arg0: i32) -> (i32, i32) {
    %c0_i32 = arith.constant 0 : i32
    %c0_i32_0 = arith.constant 0 : i32
    %c0_i32_1 = arith.constant 0 : i32
    return %c0_i32, %c0_i32_0 : i32, i32
  }
  func.func @transform_5(%arg0: i32) -> (i32, i32) {
    %c0_i32 = arith.constant 0 : i32
    %c0_i32_0 = arith.constant 0 : i32
    return %arg0, %c0_i32 : i32, i32
  }
}

</mosaic_0001>

<llo_original>
// kernel: tpu_custom_call.1
$region0: #{tpu_custom_call.1}
  #allocation0 [shape = 'u32[]', space=smem, size = 0x4, offset = 0x4, fixed_abs, tag = 'smem constant byte address 0x4 - core index']
  #allocation1 [shape = 'u32[144,128]{1,0:T(1,128)}', space=vmem, size = 0x12000, scoped, tag = 'internal scratch']
  %s0 = inlined_call_operand.vmem [shape: f32[8,1], index: 0, kind: input, shape index: {}]
  %s1 = inlined_call_operand.vmem [shape: f32[1,128], index: 1, kind: input, shape index: {}]
  %s2 = inlined_call_operand.vmem [shape: f32[1,128], index: 2, kind: input, shape index: {}]
  %s3 = inlined_call_operand.vmem [shape: f32[1,128], index: 3, kind: input, shape index: {}]
  %s4 = inlined_call_operand.vmem [shape: f32[1,128], index: 4, kind: input, shape index: {}]
  %s5 = inlined_call_operand.hbm [shape: f32[8,128], index: 5, kind: output, shape index: {}]
  %s6 = sld [smem:[#allocation0]]
  $region30: #{tpu_custom_call.1} parent=0
    _
  %s8 = ssub.s32 1, %s6
  %s9 = scalar_select 0, %s8, %s6
  $region1: #{tpu_custom_call.1} parent=0
    #allocation2 [shape = 'u8[4096]{0}', space=vmem, size = 0x1000, scoped, tag = 'output window, operand 0, single buffered']
    #allocation3 [shape = 's32[1]{0}', space=sflag, size = 0x4, scoped, tag = 'scoped memory for tpu_custom_call.1']
    %10 = vsyncpa [#allocation3], 0
    // Predicated region
    $region2: #{tpu_custom_call.1} parent=1 // pred_check
      _
    $region3: #{tpu_custom_call.1} parent=1 // pred_check_branch
      %12 = sbr.rel (0) target = $region5
    $region4: #{tpu_custom_call.1} parent=1 // pred_region
      _
    $region5: #{tpu_custom_call.1} parent=1 // pred_fallthru
      _
    // Predicated region
    $region6: #{tpu_custom_call.1} parent=1 // pred_check
      _
    $region7: #{tpu_custom_call.1} parent=1 // pred_check_branch
      %14 = sbr.rel (0) target = $region9
    $region8: #{tpu_custom_call.1} parent=1 // pred_region
      _
    $region9: #{tpu_custom_call.1} parent=1 // pred_fallthru
      _
    // Predicated region
    $region10: #{tpu_custom_call.1} parent=1 // pred_check
      _
    $region11: #{tpu_custom_call.1} parent=1 // pred_check_branch
      %16 = sbr.rel (0) target = $region13
    $region12: #{tpu_custom_call.1} parent=1 // pred_region
      _
    $region13: #{tpu_custom_call.1} parent=1 // pred_fallthru
      _
    // Predicated region
    $region14: #{tpu_custom_call.1} parent=1 // pred_check
      _
    $region15: #{tpu_custom_call.1} parent=1 // pred_check_branch
      %18 = sbr.rel (0) target = $region17
    $region16: #{tpu_custom_call.1} parent=1 // pred_region
      _
    $region17: #{tpu_custom_call.1} parent=1 // pred_fallthru
      _
    // Predicated region
    $region18: #{tpu_custom_call.1} parent=1 // pred_check
      _
    $region19: #{tpu_custom_call.1} parent=1 // pred_check_branch
      %20 = sbr.rel (0) target = $region21
    $region20: #{tpu_custom_call.1} parent=1 // pred_region
      _
    $region21: #{tpu_custom_call.1} parent=1 // pred_fallthru
      _
    %v21 = vld [vmem:[%s0] sm:$0xff]
    %v22 = vmul.f32 %v21, 6.2831855
    %v23 = vld [vmem:[%s1] sm:$0x1]
    %25 = vset.pattern.permute.xlu0 0
    %26 = vperm.xlu0 %25, %v22
    %v27 = vpop.permute.xlu0 %26
    %v30 = vlaneseq
    %v31 = vshrl.u32 %v30, 7
    %v32 = vsub.s32 0, %v31
    %v33 = vrot.slane %v23, %v32
    %v35 = vmul.f32 %v27, %v33
    %v36 = vld [vmem:[%s2] sm:$0x1]
    %v38 = vlaneseq
    %v39 = vshrl.u32 %v38, 7
    %v40 = vsub.s32 0, %v39
    %v41 = vrot.slane %v36, %v40
    %44 = vset.pattern.permute.xlu0 0
    %45 = vperm.xlu0 %44, %v21
    %v46 = vpop.permute.xlu0 %45
    %v48 = vmul.f32 %v41, %v46
    %v49 = vld [vmem:[%s3] sm:$0x1]
    %v50 = vand.u32 2147483647, %v35
    %vm51 = vcmp.le.f32.partialorder %v50, 0.7853982
    %vm52 = vcmp.lt.s32.totalorder %v35, 0
    %v53 = vand.u32 %v35, 2139095040
    %v54 = vshrl.u32 %v53, 23
    %v55 = vsub.s32 %v54, 127
    %v56 = vand.u32 2147483647, %v35
    %v57 = vand.u32 %v56, 8388607
    %v58 = vor.u32 %v57, 8388608
    %v59 = vsub.s32 0, %v58
    %v60 = vadd.s32 %v55, 1
    %vm61 = vcmp.gt.s32.totalorder %v60, 0
    %v62 = vsel %vm61, %v60, 0
    %v63 = vshrl.u32 %v62, 5
    %v64 = vand.u32 %v62, 31
    %v65 = vsub.s32 32, %v64
    %v66 = vshrl.u32 683565275, %v65
    %v67 = vshll.u32 683565275, %v64
    %v68 = vshrl.u32 2475754826, %v65
    %v69 = vor.u32 %v67, %v68
    %v70 = vshll.u32 2475754826, %v64
    %v71 = vshrl.u32 2131351028, %v65
    %v72 = vor.u32 %v70, %v71
    %v73 = vshll.u32 2131351028, %v64
    %v74 = vshrl.u32 2102212464, %v65
    %v75 = vor.u32 %v73, %v74
    %v76 = vshll.u32 2102212464, %v64
    %v77 = vshrl.u32 920167782, %v65
    %v78 = vor.u32 %v76, %v77
    %v79 = vshll.u32 920167782, %v64
    %v80 = vshrl.u32 1326507024, %v65
    %v81 = vor.u32 %v79, %v80
    %vm82 = vcmp.lt.s32.totalorder %v63, 1
    %vm83 = vcmp.lt.s32.totalorder %v63, 2
    %vm84 = vcmp.lt.s32.totalorder %v63, 3
    %vm85 = vcmp.lt.s32.totalorder %v63, 4
    %v86 = vsel %vm82, %v66, %v69
    %v87 = vsel %vm85, %v75, 2102212464
    %v88 = vsel %vm84, %v72, %v87
    %v89 = vsel %vm83, %v86, %v88
    %v90 = vsel %vm82, %v69, %v72
    %v91 = vsel %vm85, %v78, 920167782
    %v92 = vsel %vm84, %v75, %v91
    %v93 = vsel %vm83, %v90, %v92
    %v94 = vsel %vm82, %v72, %v75
    %v95 = vsel %vm85, %v81, 1326507024
    %v96 = vsel %vm84, %v78, %v95
    %v97 = vsel %vm83, %v94, %v96
    %v98 = vshll.u32 %v58, 8
    %v99 = vmul.u32.u64.compose %v98, %v97
    %v100 = vextract.low.u32 %v99
    %v101 = vextract.high.u32 %v99
    %v102 = vmul.u32.u64.compose %v98, %v93
    %v103 = vextract.low.u32 %v102
    %v104 = vextract.high.u32 %v102
    %v105 = vmul.u32 %v98, %v89
    %v106 = vadd.s32 %v101, %v103
    %vm107 = vc.u32 %v101, %v103
    %v108 = vadd.s32 %v104, 1
    %v109 = vsel %vm107, %v108, %v104
    %v110 = vadd.s32 %v105, %v109
    %v111 = vadd.s32 %v110, 536870912
    %v112 = vshrl.u32 %v111, 30
    %v113 = vshll.u32 %v112, 30
    %v114 = vsub.s32 %v110, %v113
    %vm115 = vcmp.lt.s32.totalorder %v114, 0
    %v116 = vsub.s32 0, %v114
    %v117 = vsel %vm115, %v116, %v114
    %v118 = vclz %v117
    %v119 = vsub.s32 %v118, 2
    %vm120 = vcmp.gt.s32.totalorder 0, %v119
    %v121 = vsel %vm120, 0, %v119
    %v122 = vsub.s32 32, %v121
    %v123 = vshll.u32 %v114, %v121
    %v124 = vshrl.u32 %v106, %v122
    %v125 = vor.u32 %v123, %v124
    %v126 = vsub.s32 4294967266, %v121
    %v127 = vadd.s32 %v126, 127
    %v128 = vshll.u32 %v127, 23
    %v129 = vor.u32 4788187, %v128
    %v130 = vand.u32 2147483647, %v129
    %v132 = vcvt.s32.f32 %v125
    %v133 = vmul.f32 %v132, %v130
    %v134 = vxor.u32 %v133, 2147483648
    %v135 = vsel %vm52, %v134, %v133
    %v136 = vsub.s32 4, %v112
    %v137 = vsel %vm52, %v136, %v112
    %v138 = vsel %vm51, %v35, %v135
    %v139 = vsel %vm51, 0, %v137
    %v140 = vcosq.f32.pop %v138
    %v141 = vsinq.f32.pop %v138
    %vm142 = vweird.f32 %v35
    %v143 = vadd.s32 %v139, 3
    %v144 = vand.u32 %v143, 3
    %vm145 = vcmp.lt.s32.totalorder %v144, 2
    %vm146 = vcmp.eq.s32.totalorder %v144, 0
    %v147 = vxor.u32 %v141, 2147483648
    %v148 = vsel %vm146, %v140, %v147
    %vm149 = vcmp.eq.s32.totalorder %v144, 2
    %v150 = vxor.u32 %v140, 2147483648
    %v151 = vsel %vm149, %v150, %v141
    %v152 = vsel %vm145, %v148, %v151
    %v153 = vsel %vm142, nan, %v152
    %v155 = vlaneseq
    %v156 = vshrl.u32 %v155, 7
    %v157 = vsub.s32 0, %v156
    %v158 = vrot.slane %v49, %v157
    %v160 = vmul.f32 %v158, %v153
    %v161 = vadd.f32 %v48, %v160
    %v162 = vld [vmem:[%s4] sm:$0x1]
    %v163 = vand.u32 2147483647, %v35
    %vm164 = vcmp.le.f32.partialorder %v163, 0.7853982
    %vm165 = vcmp.lt.s32.totalorder %v35, 0
    %v166 = vand.u32 %v35, 2139095040
    %v167 = vshrl.u32 %v166, 23
    %v168 = vsub.s32 %v167, 127
    %v169 = vand.u32 2147483647, %v35
    %v170 = vand.u32 %v169, 8388607
    %v171 = vor.u32 %v170, 8388608
    %v172 = vsub.s32 0, %v171
    %v173 = vadd.s32 %v168, 1
    %vm174 = vcmp.gt.s32.totalorder %v173, 0
    %v175 = vsel %vm174, %v173, 0
    %v176 = vshrl.u32 %v175, 5
    %v177 = vand.u32 %v175, 31
    %v178 = vsub.s32 32, %v177
    %v179 = vshrl.u32 683565275, %v178
    %v180 = vshll.u32 683565275, %v177
    %v181 = vshrl.u32 2475754826, %v178
    %v182 = vor.u32 %v180, %v181
    %v183 = vshll.u32 2475754826, %v177
    %v184 = vshrl.u32 2131351028, %v178
    %v185 = vor.u32 %v183, %v184
    %v186 = vshll.u32 2131351028, %v177
    %v187 = vshrl.u32 2102212464, %v178
    %v188 = vor.u32 %v186, %v187
    %v189 = vshll.u32 2102212464, %v177
    %v190 = vshrl.u32 920167782, %v178
    %v191 = vor.u32 %v189, %v190
    %v192 = vshll.u32 920167782, %v177
    %v193 = vshrl.u32 1326507024, %v178
    %v194 = vor.u32 %v192, %v193
    %vm195 = vcmp.lt.s32.totalorder %v176, 1
    %vm196 = vcmp.lt.s32.totalorder %v176, 2
    %vm197 = vcmp.lt.s32.totalorder %v176, 3
    %vm198 = vcmp.lt.s32.totalorder %v176, 4
    %v199 = vsel %vm195, %v179, %v182
    %v200 = vsel %vm198, %v188, 2102212464
    %v201 = vsel %vm197, %v185, %v200
    %v202 = vsel %vm196, %v199, %v201
    %v203 = vsel %vm195, %v182, %v185
    %v204 = vsel %vm198, %v191, 920167782
    %v205 = vsel %vm197, %v188, %v204
    %v206 = vsel %vm196, %v203, %v205
    %v207 = vsel %vm195, %v185, %v188
    %v208 = vsel %vm198, %v194, 1326507024
    %v209 = vsel %vm197, %v191, %v208
    %v210 = vsel %vm196, %v207, %v209
    %v211 = vshll.u32 %v171, 8
    %v212 = vmul.u32.u64.compose %v211, %v210
    %v213 = vextract.low.u32 %v212
    %v214 = vextract.high.u32 %v212
    %v215 = vmul.u32.u64.compose %v211, %v206
    %v216 = vextract.low.u32 %v215
    %v217 = vextract.high.u32 %v215
    %v218 = vmul.u32 %v211, %v202
    %v219 = vadd.s32 %v214, %v216
    %vm220 = vc.u32 %v214, %v216
    %v221 = vadd.s32 %v217, 1
    %v222 = vsel %vm220, %v221, %v217
    %v223 = vadd.s32 %v218, %v222
    %v224 = vadd.s32 %v223, 536870912
    %v225 = vshrl.u32 %v224, 30
    %v226 = vshll.u32 %v225, 30
    %v227 = vsub.s32 %v223, %v226
    %vm228 = vcmp.lt.s32.totalorder %v227, 0
    %v229 = vsub.s32 0, %v227
    %v230 = vsel %vm228, %v229, %v227
    %v231 = vclz %v230
    %v232 = vsub.s32 %v231, 2
    %vm233 = vcmp.gt.s32.totalorder 0, %v232
    %v234 = vsel %vm233, 0, %v232
    %v235 = vsub.s32 32, %v234
    %v236 = vshll.u32 %v227, %v234
    %v237 = vshrl.u32 %v219, %v235
    %v238 = vor.u32 %v236, %v237
    %v239 = vsub.s32 4294967266, %v234
    %v240 = vadd.s32 %v239, 127
    %v241 = vshll.u32 %v240, 23
    %v242 = vor.u32 4788187, %v241
    %v243 = vand.u32 2147483647, %v242
    %v245 = vcvt.s32.f32 %v238
    %v246 = vmul.f32 %v245, %v243
    %v247 = vxor.u32 %v246, 2147483648
    %v248 = vsel %vm165, %v247, %v246
    %v249 = vsub.s32 4, %v225
    %v250 = vsel %vm165, %v249, %v225
    %v251 = vsel %vm164, %v35, %v248
    %v252 = vsel %vm164, 0, %v250
    %v253 = vcosq.f32.pop %v251
    %v254 = vsinq.f32.pop %v251
    %vm255 = vweird.f32 %v35
    %v256 = vand.u32 %v252, 3
    %vm257 = vcmp.lt.s32.totalorder %v256, 2
    %vm258 = vcmp.eq.s32.totalorder %v256, 0
    %v259 = vxor.u32 %v254, 2147483648
    %v260 = vsel %vm258, %v253, %v259
    %vm261 = vcmp.eq.s32.totalorder %v256, 2
    %v262 = vxor.u32 %v253, 2147483648
    %v263 = vsel %vm261, %v262, %v254
    %v264 = vsel %vm257, %v260, %v263
    %v265 = vsel %vm255, nan, %v264
    %v267 = vlaneseq
    %v268 = vshrl.u32 %v267, 7
    %v269 = vsub.s32 0, %v268
    %v270 = vrot.slane %v162, %v269
    %v272 = vmul.f32 %v270, %v265
    %v273 = vadd.f32 %v161, %v272
    %274 = vst [vmem:[#allocation2] sm:$0xff] %v273
    // Predicated region
    $region22: #{tpu_custom_call.1} parent=1 // pred_check
      _
    $region23: #{tpu_custom_call.1} parent=1 // pred_check_branch
      %276 = sbr.rel (0) target = $region25
    $region24: #{tpu_custom_call.1} parent=1 // pred_region
      %s278 = ssub.s32 128, 128
      %279 = vsyncadd [#allocation3], %s278
      %s281 = sshll.u32 [#allocation2], 4
      %s282 = int_to_ptr.vmem [resolvable:$true] %s281
      %284 = dma.vmem_to_hbm [thread:$0]  %s282, 128, %s5, [#allocation3]
    $region25: #{tpu_custom_call.1} parent=1 // pred_fallthru
      _
    // Predicated region
    $region26: #{tpu_custom_call.1} parent=1 // pred_check
      _
    $region27: #{tpu_custom_call.1} parent=1 // pred_check_branch
      %286 = sbr.rel (0) target = $region29
    $region28: #{tpu_custom_call.1} parent=1 // pred_region
      %287 = dma.done [#allocation3], 128
    $region29: #{tpu_custom_call.1} parent=1 // pred_fallthru
      _
    %288 = vsyncpa [#allocation3], 1

</llo_original>
